<compile_context>
chip_gen: v5e
topology: v5e:2x2
jax: 0.10.0
libtpu: 0.0.40
codegen_flags: <defaults>
</compile_context>

<pallas_src>
import jax
import jax.numpy as jnp
from jax.experimental import pallas as pl
from jax.experimental.pallas import tpu as pltpu

# Each packed parameter section starts on a 16-row boundary: one full sublane
# tile for both f32 (8,128) and bf16 (16,128) layouts, so in-kernel static
# slices never straddle a tile start.
ROW_ALIGN = 16


def _round_up(n, m):
    return ((n + m - 1) // m) * m


def init_params(key, input_size, hidden_sizes, output_size):
    """PyTorch-style uniform(+-1/sqrt(fan_in)) init, stored as [in, out]."""
    dims = [input_size, hidden_sizes[0], hidden_sizes[1], output_size]
    params = []
    for i in range(3):
        fan_in, fan_out = dims[i], dims[i + 1]
        key, kw, kb = jax.random.split(key, 3)
        bound = 1.0 / jnp.sqrt(float(fan_in))
        w = jax.random.uniform(kw, (fan_in, fan_out), jnp.float32, -bound, bound)
        b = jax.random.uniform(kb, (1, fan_out), jnp.float32, -bound, bound)
        params += [w, b]
    return tuple(params)


def pack_params(params, dtype=jnp.bfloat16):
    """Pack w1,b1,w2,b2,w3,b3 into a single 2-D buffer (one DMA).

    Column width = widest feature dim (32).  Every section starts on a
    ROW_ALIGN boundary; padding rows / columns are zero (never read by the
    kernel, which slices exact shapes).  Returns (packed, row_offsets).
    """
    cols = max(p.shape[1] for p in params)
    sections, offsets, row = [], [], 0
    for p in params:
        r, c = p.shape
        rp = _round_up(r, ROW_ALIGN)
        block = jnp.zeros((rp, cols), dtype).at[:r, :c].set(p.astype(dtype))
        sections.append(block)
        offsets.append(row)
        row += rp
    return jnp.concatenate(sections, axis=0), tuple(offsets)


def _make_kernel(dims, offsets):
    in_dim, h1, h2, out_dim = dims
    o_w1, o_b1, o_w2, o_b2, o_w3, o_b3 = offsets
    f32 = jnp.float32

    def kernel(x_ref, p_ref, o_ref):
        cd = p_ref.dtype  # matmul operand dtype (bf16 by default)
        x = x_ref[...]

        # Static, aligned slices out of the single packed parameter buffer.
        w1 = p_ref[o_w1:o_w1 + in_dim, :h1]
        b1 = p_ref[o_b1:o_b1 + 1, :h1].astype(f32)
        w2 = p_ref[o_w2:o_w2 + h1, :h2]
        b2 = p_ref[o_b2:o_b2 + 1, :h2].astype(f32)
        w3 = p_ref[o_w3:o_w3 + h2, :out_dim]
        b3 = p_ref[o_b3:o_b3 + 1, :out_dim].astype(f32)

        # MXU matmuls with f32 accumulation; bias + ReLU on the VPU in f32.
        h = jnp.dot(x, w1, preferred_element_type=f32) + b1
        h = jnp.maximum(h, 0.0)
        h = jnp.dot(h.astype(cd), w2, preferred_element_type=f32) + b2
        h = jnp.maximum(h, 0.0)
        out = jnp.dot(h.astype(cd), w3, preferred_element_type=f32) + b3
        o_ref[...] = out.astype(o_ref.dtype)

    return kernel


def gesture_model_forward(x, packed, offsets, dims, *, batch_tile=None):
    """Fused 3-layer MLP forward.  `packed`/`offsets` from pack_params()."""
    in_dim, h1, h2, out_dim = dims
    B = x.shape[0]
    assert x.shape[1] == in_dim
    out_dtype = x.dtype

    compute_dtype = packed.dtype
    x_c = x.astype(compute_dtype)  # halves x HBM bytes when bf16

    if batch_tile is None:
        if B <= 256:
            batch_tile = B  # single grid step: minimal fixed overhead
        else:
            # >= 2 steps so ("parallel",) can use both v7x TensorCores;
            # 2048-row cap keeps tiles well inside every chip's scoped VMEM.
            batch_tile = min(2048, _round_up(pl.cdiv(B, 2), 8))
    batch_tile = min(batch_tile, B)
    num_tiles = pl.cdiv(B, batch_tile)
    grid = (num_tiles,)

    # Advisory cost hint with TRUE (unpadded / packed) byte counts.
    flops = 2 * B * (in_dim * h1 + h1 * h2 + h2 * out_dim)
    bytes_accessed = (x_c.size * x_c.dtype.itemsize
                      + packed.size * packed.dtype.itemsize
                      + B * out_dim * jnp.dtype(out_dtype).itemsize)
    cost = pl.CostEstimate(flops=flops, transcendentals=0,
                           bytes_accessed=bytes_accessed)

    in_specs = [
        pl.BlockSpec((batch_tile, in_dim), lambda i: (i, 0)),  # x (batch-tiled)
        pl.BlockSpec(packed.shape, lambda i: (0, 0)),          # all params, resident
    ]
    out_specs = pl.BlockSpec((batch_tile, out_dim), lambda i: (i, 0))

    sem = "parallel" if num_tiles > 1 else "arbitrary"

    return pl.pallas_call(
        _make_kernel(dims, offsets),
        out_shape=jax.ShapeDtypeStruct((B, out_dim), out_dtype),
        grid_spec=pltpu.PrefetchScalarGridSpec(
            num_scalar_prefetch=0,
            grid=grid,
            in_specs=in_specs,
            out_specs=out_specs,
        ),
        compiler_params=pltpu.CompilerParams(dimension_semantics=(sem,)),
        cost_estimate=cost,
    )(x_c, packed)


def reference_forward(x, params, compute_dtype=jnp.float32):
    """Pure-JAX reference mirroring the kernel's cast sequence."""
    w1, b1, w2, b2, w3, b3 = params
    cd, f32 = compute_dtype, jnp.float32
    h = jnp.dot(x.astype(cd), w1.astype(cd), preferred_element_type=f32)
    h = jnp.maximum(h + b1.astype(cd).astype(f32), 0.0)
    h = jnp.dot(h.astype(cd), w2.astype(cd), preferred_element_type=f32)
    h = jnp.maximum(h + b2.astype(cd).astype(f32), 0.0)
    out = jnp.dot(h.astype(cd), w3.astype(cd), preferred_element_type=f32)
    return out + b3.astype(cd).astype(f32)


if __name__ == "__main__":
    # Shapes consistent with the module: 64 -> 32 -> 32 -> 16.
    input_size = 64
    hidden_sizes = [32, 32]
    output_size = 16
    batch = 16

    key = jax.random.PRNGKey(0)
    key, kx = jax.random.split(key)
    x = jax.random.normal(kx, (batch, input_size), jnp.float32)
    params = init_params(key, input_size, hidden_sizes, output_size)

    dims = (input_size, hidden_sizes[0], hidden_sizes[1], output_size)
    packed, offsets = pack_params(params, dtype=jnp.bfloat16)

    out = gesture_model_forward(x, packed, offsets, dims)
    out = jax.block_until_ready(out)

    ref_bf16 = reference_forward(x, params, compute_dtype=jnp.bfloat16)
    ref_f32 = reference_forward(x, params, compute_dtype=jnp.float32)

    assert out.shape == (batch, output_size)
    assert jnp.allclose(out, ref_bf16, atol=5e-3, rtol=5e-3)   # same math, same casts
    assert jnp.allclose(out, ref_f32, atol=5e-2, rtol=5e-2)    # vs. full-f32 module

    print("KERNEL_OK")
</pallas_src>

<mosaic_0001>
module attributes {stable_mosaic.version = 11 : i64} {
  func.func @kernel(%arg0: i32, %arg1: memref<16x64xbf16, #tpu.memory_space<vmem>>, %arg2: memref<176x32xbf16, #tpu.memory_space<vmem>>, %arg3: memref<16x16xf32, #tpu.memory_space<vmem>>) attributes {dimension_semantics = [#tpu.dimension_semantics<arbitrary>], iteration_bounds = array<i64: 1>, scalar_prefetch = 0 : i64, scratch_operands = 0 : i64, tpu.core_type = #tpu.core_type<tc>, window_params = [{transform_indices = @transform_0, window_bounds = array<i64: 16, 64>}, {pipeline_mode = #tpu.pipeline_mode<synchronous>, transform_indices = @transform_1, window_bounds = array<i64: 176, 32>}, {transform_indices = @transform_2, window_bounds = array<i64: 16, 16>}]} {
    %c0 = arith.constant 0 : index
    %c0_0 = arith.constant 0 : index
    %0 = vector.load %arg1[%c0, %c0_0] : memref<16x64xbf16, #tpu.memory_space<vmem>>, vector<16x64xbf16>
    %c0_1 = arith.constant 0 : index
    %c0_2 = arith.constant 0 : index
    %1 = vector.load %arg2[%c0_1, %c0_2] : memref<176x32xbf16, #tpu.memory_space<vmem>>, vector<64x32xbf16>
    %c64 = arith.constant 64 : index
    %c0_3 = arith.constant 0 : index
    %2 = vector.load %arg2[%c64, %c0_3] : memref<176x32xbf16, #tpu.memory_space<vmem>>, vector<1x32xbf16>
    %3 = arith.extf %2 : vector<1x32xbf16> to vector<1x32xf32>
    %c80 = arith.constant 80 : index
    %c0_4 = arith.constant 0 : index
    %4 = vector.load %arg2[%c80, %c0_4] : memref<176x32xbf16, #tpu.memory_space<vmem>>, vector<32x32xbf16>
    %c112 = arith.constant 112 : index
    %c0_5 = arith.constant 0 : index
    %5 = vector.load %arg2[%c112, %c0_5] : memref<176x32xbf16, #tpu.memory_space<vmem>>, vector<1x32xbf16>
    %6 = arith.extf %5 : vector<1x32xbf16> to vector<1x32xf32>
    %c128 = arith.constant 128 : index
    %c0_6 = arith.constant 0 : index
    %7 = vector.load %arg2[%c128, %c0_6] : memref<176x32xbf16, #tpu.memory_space<vmem>>, vector<32x16xbf16>
    %c160 = arith.constant 160 : index
    %c0_7 = arith.constant 0 : index
    %8 = vector.load %arg2[%c160, %c0_7] : memref<176x32xbf16, #tpu.memory_space<vmem>>, vector<1x16xbf16>
    %9 = arith.extf %8 : vector<1x16xbf16> to vector<1x16xf32>
    %cst = arith.constant dense<0.000000e+00> : vector<16x32xf32>
    %10 = tpu.matmul %0, %1, %cst {dimension_numbers = #tpu.dot_dimension_numbers<[1], [0], [0], [1], [0, 0, 1, 1], [], []>} : vector<16x64xbf16>, vector<64x32xbf16>, vector<16x32xf32> -> vector<16x32xf32>
    %11 = vector.broadcast %3 : vector<1x32xf32> to vector<16x32xf32>
    %12 = arith.addf %10, %11 : vector<16x32xf32>
    %cst_8 = arith.constant 0.000000e+00 : f32
    %13 = vector.broadcast %cst_8 : f32 to vector<16x32xf32>
    %14 = arith.maximumf %12, %13 : vector<16x32xf32>
    %15 = arith.truncf %14 : vector<16x32xf32> to vector<16x32xbf16>
    %cst_9 = arith.constant dense<0.000000e+00> : vector<16x32xf32>
    %16 = tpu.matmul %15, %4, %cst_9 {dimension_numbers = #tpu.dot_dimension_numbers<[1], [0], [0], [1], [0, 0, 1, 1], [], []>} : vector<16x32xbf16>, vector<32x32xbf16>, vector<16x32xf32> -> vector<16x32xf32>
    %17 = vector.broadcast %6 : vector<1x32xf32> to vector<16x32xf32>
    %18 = arith.addf %16, %17 : vector<16x32xf32>
    %cst_10 = arith.constant 0.000000e+00 : f32
    %19 = vector.broadcast %cst_10 : f32 to vector<16x32xf32>
    %20 = arith.maximumf %18, %19 : vector<16x32xf32>
    %21 = arith.truncf %20 : vector<16x32xf32> to vector<16x32xbf16>
    %cst_11 = arith.constant dense<0.000000e+00> : vector<16x16xf32>
    %22 = tpu.matmul %21, %7, %cst_11 {dimension_numbers = #tpu.dot_dimension_numbers<[1], [0], [0], [1], [0, 0, 1, 1], [], []>} : vector<16x32xbf16>, vector<32x16xbf16>, vector<16x16xf32> -> vector<16x16xf32>
    %23 = vector.broadcast %9 : vector<1x16xf32> to vector<16x16xf32>
    %24 = arith.addf %22, %23 : vector<16x16xf32>
    %c0_12 = arith.constant 0 : index
    %c0_13 = arith.constant 0 : index
    %25 = vector.load %arg3[%c0_12, %c0_13] : memref<16x16xf32, #tpu.memory_space<vmem>>, vector<16x16xf32>
    tpu.vector_store %arg3[%c0_12, %c0_13], %24 {strides = array<i32>} : memref<16x16xf32, #tpu.memory_space<vmem>>, vector<16x16xf32>,
    return
  }
  func.func @transform_0(%arg0: i32) -> (i32, i32) {
    %c0_i32 = arith.constant 0 : i32
    %c0_i32_0 = arith.constant 0 : i32
    return %arg0, %c0_i32 : i32, i32
  }
  func.func @transform_1(%arg0: i32) -> (i32, i32) {
    %c0_i32 = arith.constant 0 : i32
    %c0_i32_0 = arith.constant 0 : i32
    %c0_i32_1 = arith.constant 0 : i32
    return %c0_i32, %c0_i32_0 : i32, i32
  }
  func.func @transform_2(%arg0: i32) -> (i32, i32) {
    %c0_i32 = arith.constant 0 : i32
    %c0_i32_0 = arith.constant 0 : i32
    return %arg0, %c0_i32 : i32, i32
  }
}

</mosaic_0001>

<llo_original>
// kernel: tpu_custom_call.1
$region0: #{tpu_custom_call.1}
  #allocation0 [shape = 'u32[]', space=smem, size = 0x4, offset = 0x4, fixed_abs, tag = 'smem constant byte address 0x4 - core index']
  #allocation1 [shape = 'u32[72,128]{1,0:T(1,128)}', space=vmem, size = 0x9000, scoped, tag = 'internal scratch']
  %s0 = inlined_call_operand.vmem [shape: bf16[16,64], index: 0, kind: input, shape index: {}]
  %s1 = inlined_call_operand.vmem [shape: bf16[176,32], index: 1, kind: input, shape index: {}]
  %s2 = inlined_call_operand.hbm [shape: f32[16,16], index: 2, kind: output, shape index: {}]
  %s3 = sld [smem:[#allocation0]]
  $region18: #{tpu_custom_call.1} parent=0
    _
  %s5 = ssub.s32 1, %s3
  %s6 = scalar_select 0, %s5, %s3
  $region1: #{tpu_custom_call.1} parent=0
    #allocation2 [shape = 'u8[8192]{0}', space=vmem, size = 0x2000, scoped, tag = 'output window, operand 0, single buffered']
    #allocation3 [shape = 's32[1]{0}', space=sflag, size = 0x4, scoped, tag = 'scoped memory for tpu_custom_call.1']
    %7 = vsyncpa [#allocation3], 0
    // Predicated region
    $region2: #{tpu_custom_call.1} parent=1 // pred_check
      _
    $region3: #{tpu_custom_call.1} parent=1 // pred_check_branch
      %9 = sbr.rel (0) target = $region5
    $region4: #{tpu_custom_call.1} parent=1 // pred_region
      _
    $region5: #{tpu_custom_call.1} parent=1 // pred_fallthru
      _
    // Predicated region
    $region6: #{tpu_custom_call.1} parent=1 // pred_check
      _
    $region7: #{tpu_custom_call.1} parent=1 // pred_check_branch
      %11 = sbr.rel (0) target = $region9
    $region8: #{tpu_custom_call.1} parent=1 // pred_region
      _
    $region9: #{tpu_custom_call.1} parent=1 // pred_fallthru
      _
    %v13 = vld [vmem:[%s0] sm:$0xf]
    %v14 = vld [vmem:[%s0 + $0x4] sm:$0xf]
    %v15 = vld [vmem:[%s1] sm:$0xf]
    %v16 = vld [vmem:[%s1 + $0x4] sm:$0xf]
    %v17 = vld [vmem:[%s1 + $0x8] sm:$0xf]
    %v18 = vld [vmem:[%s1 + $0xc] sm:$0xf]
    %v19 = vld [vmem:[%s1 + $0x10] sm:$0xf]
    %v20 = vld [vmem:[%s1 + $0x14] sm:$0xf]
    %v21 = vld [vmem:[%s1 + $0x18] sm:$0xf]
    %v22 = vld [vmem:[%s1 + $0x1c] sm:$0xf]
    %v23 = vld [vmem:[%s1 + $0x20] sm:$0x1]
    %v24 = vunpack.c.l.bf16 %v23
    %v25 = vld [vmem:[%s1 + $0x28] sm:$0xf]
    %v26 = vld [vmem:[%s1 + $0x2c] sm:$0xf]
    %v27 = vld [vmem:[%s1 + $0x30] sm:$0xf]
    %v28 = vld [vmem:[%s1 + $0x34] sm:$0xf]
    %v29 = vld [vmem:[%s1 + $0x38] sm:$0x1]
    %v30 = vunpack.c.l.bf16 %v29
    %v31 = vld [vmem:[%s1 + $0x40] sm:$0xf]
    %v32 = vld [vmem:[%s1 + $0x44] sm:$0xf]
    %v33 = vld [vmem:[%s1 + $0x48] sm:$0xf]
    %v34 = vld [vmem:[%s1 + $0x4c] sm:$0xf]
    %v35 = vld [vmem:[%s1 + $0x50] sm:$0x1]
    %v36 = vunpack.c.l.bf16 %v35
    %v37 = vperm.slane %v24, 0
    %v40 = vunpack.c.l.b16 %v13
    %v41 = vunpack.c.l.b16 %v14
    %v42 = vpack.c.b16 %v41, %v40
    %v51 = vunpack.c.l.b16 %v15
    %v52 = vunpack.c.l.b16 %v16
    %v53 = vunpack.c.l.b16 %v17
    %v54 = vunpack.c.l.b16 %v18
    %v55 = vunpack.c.l.b16 %v19
    %v56 = vunpack.c.l.b16 %v20
    %v57 = vunpack.c.l.b16 %v21
    %v58 = vunpack.c.l.b16 %v22
    %v59 = vpack.c.b16 %v52, %v51
    %v60 = vpack.c.b16 %v54, %v53
    %v61 = vpack.c.b16 %v56, %v55
    %v62 = vpack.c.b16 %v58, %v57
    %vm67 = vcmask 523264
    %v69 = vsel %vm67, %v42, 0
    %71 = vmatpush.bf16.msra.mxu0 0
    %72 = vmatpush.bf16.msra.mxu0 0
    %73 = vmatpush.bf16.msra.mxu0 0
    %74 = vmatpush.bf16.msra.mxu0 0
    %75 = vmatpush.bf16.msra.mxu0 %v62
    %76 = vmatpush.bf16.msra.mxu0 %v61
    %77 = vmatpush.bf16.msra.mxu0 %v60
    %78 = vmatpush.bf16.msra.mxu0 %v59
    %79 = vmatmul.bf16.gmra.mxu0 %v69
    %v80 = vpop.f32.mrf.mxu0
    %v81 = vadd.f32 %v37, %v80
    %v82 = vpop.f32.mrf.mxu0
    %v83 = vadd.f32 %v37, %v82
    %84 = vdwg.mxu0
    %v85 = vmax.f32 %v81, 0.0
    %v86 = vmax.f32 %v83, 0.0
    %v87 = vpack.c.bf16 %v86, %v85
    %v88 = vperm.slane %v30, 0
    %v93 = vunpack.c.l.b16 %v25
    %v94 = vunpack.c.l.b16 %v26
    %v95 = vunpack.c.l.b16 %v27
    %v96 = vunpack.c.l.b16 %v28
    %v97 = vpack.c.b16 %v94, %v93
    %v98 = vpack.c.b16 %v96, %v95
    %vm101 = vcmask 261120
    %v103 = vsel %vm101, %v87, 0
    %105 = vmatpush.bf16.msra.mxu0 0
    %106 = vmatpush.bf16.msra.mxu0 0
    %107 = vmatpush.bf16.msra.mxu0 0
    %108 = vmatpush.bf16.msra.mxu0 0
    %109 = vmatpush.bf16.msra.mxu0 0
    %110 = vmatpush.bf16.msra.mxu0 0
    %111 = vmatpush.bf16.msra.mxu0 %v98
    %112 = vmatpush.bf16.msra.mxu0 %v97
    %113 = vmatmul.bf16.gmra.mxu0 %v103
    %v114 = vpop.f32.mrf.mxu0
    %v115 = vadd.f32 %v88, %v114
    %v116 = vpop.f32.mrf.mxu0
    %v117 = vadd.f32 %v88, %v116
    %118 = vdwg.mxu0
    %v119 = vmax.f32 %v115, 0.0
    %v120 = vmax.f32 %v117, 0.0
    %v121 = vpack.c.bf16 %v120, %v119
    %v122 = vperm.slane %v36, 0
    %v127 = vunpack.c.l.b16 %v31
    %v128 = vunpack.c.l.b16 %v32
    %v129 = vunpack.c.l.b16 %v33
    %v130 = vunpack.c.l.b16 %v34
    %v131 = vpack.c.b16 %v128, %v127
    %v132 = vpack.c.b16 %v130, %v129
    %v136 = vsel %vm101, %v121, 0
    %138 = vmatpush.bf16.msra.mxu0 0
    %139 = vmatpush.bf16.msra.mxu0 0
    %140 = vmatpush.bf16.msra.mxu0 0
    %141 = vmatpush.bf16.msra.mxu0 0
    %142 = vmatpush.bf16.msra.mxu0 0
    %143 = vmatpush.bf16.msra.mxu0 0
    %144 = vmatpush.bf16.msra.mxu0 %v132
    %145 = vmatpush.bf16.msra.mxu0 %v131
    %146 = vmatmul.bf16.gmra.mxu0 %v136
    %v147 = vpop.f32.mrf.mxu0
    %v148 = vadd.f32 %v122, %v147
    %v149 = vpop.f32.mrf.mxu0
    %v150 = vadd.f32 %v122, %v149
    %151 = vdwg.mxu0
    %vm152 = vcmask 130048
    %153 = vst.msk [vmem:[#allocation2] sm:$0xff] %vm152, %v148
    %154 = vst.msk [vmem:[#allocation2 + $0x8] sm:$0xff] %vm152, %v150
    // Predicated region
    $region10: #{tpu_custom_call.1} parent=1 // pred_check
      _
    $region11: #{tpu_custom_call.1} parent=1 // pred_check_branch
      %156 = sbr.rel (0) target = $region13
    $region12: #{tpu_custom_call.1} parent=1 // pred_region
      %158 = vsyncadd [#allocation3], 0
      %s159 = sshll.u32 [#allocation2], 4
      %s160 = int_to_ptr.vmem [resolvable:$true] %s159
      %s161 = sshll.u32 %s2, 4
      %s162 = int_to_ptr.hbm [resolvable:$true] %s161
      %167 = dma.vmem_to_hbm [thread:$0]  %s160, 256, %s162, [#allocation3], 128, 128, 8
    $region13: #{tpu_custom_call.1} parent=1 // pred_fallthru
      _
    // Predicated region
    $region14: #{tpu_custom_call.1} parent=1 // pred_check
      _
    $region15: #{tpu_custom_call.1} parent=1 // pred_check_branch
      %169 = sbr.rel (0) target = $region17
    $region16: #{tpu_custom_call.1} parent=1 // pred_region
      %171 = dma.done [#allocation3], 256
    $region17: #{tpu_custom_call.1} parent=1 // pred_fallthru
      _
    %172 = vsyncpa [#allocation3], 1

</llo_original>
